<compile_context>
chip_gen: v5e
topology: v5e:2x2
jax: 0.10.0
libtpu: 0.0.40
codegen_flags: <defaults>
</compile_context>

<pallas_src>
import functools

import jax
import jax.numpy as jnp
from jax.experimental import pallas as pl
from jax.experimental.pallas import tpu as pltpu


def _round_up(x: int, m: int) -> int:
    return ((x + m - 1) // m) * m


# ----------------------------------------------------------------------------
# Fused whole-MLP kernel: activations stay resident in VMEM across layers.
# ----------------------------------------------------------------------------
def _mlp_fused_kernel(x_ref, w_ref, b_ref, o_ref, h_ref, *,
                      n_layers: int, k_pad: int, n_pad: int, compute_dtype):
    # x_ref: (tm, k_pad) compute dtype          (same block for every layer l)
    # w_ref: (1, k_pad, n_pad) compute dtype    (layer l's padded weight)
    # b_ref: (1, 1, n_pad) f32                  (layer l's padded bias)
    # o_ref: (tm, np_last) out dtype
    # h_ref: (tm, max(k_pad, n_pad)) f32 scratch (resident activation)
    l = pl.program_id(1)

    @pl.when(l == 0)
    def _():
        h_ref[:, :k_pad] = x_ref[...].astype(jnp.float32)

    lhs = h_ref[:, :k_pad].astype(compute_dtype)
    acc = jnp.dot(lhs, w_ref[0], preferred_element_type=jnp.float32)
    pre = acc + b_ref[0]                      # (tm, n_pad), f32

    is_last = l == n_layers - 1
    # ReLU on hidden layers only; padded columns are 0 and stay 0 either way.
    h_ref[:, :n_pad] = jnp.where(is_last, pre, jnp.maximum(pre, 0.0))

    @pl.when(is_last)
    def _():
        o_ref[...] = pre[:, : o_ref.shape[1]].astype(o_ref.dtype)


def mlp_fused_pallas(params, x, *, compute_dtype=jnp.bfloat16, out_dtype=None):
    """Whole MLP in one pallas_call; activations never leave VMEM."""
    B, in_dim = x.shape
    L = len(params)
    out_dim = params[-1][0].shape[1]
    out_dtype = out_dtype or x.dtype

    k_pad = max(_round_up(w.shape[0], 128) for (w, _) in params)
    n_pad = max(_round_up(w.shape[1], 128) for (w, _) in params)
    d_max = max(k_pad, n_pad)
    np_last = _round_up(out_dim, 128)

    tm = min(256, _round_up(B, 16))
    Mp = _round_up(B, tm)

    xc = jnp.pad(x.astype(compute_dtype), ((0, Mp - B), (0, k_pad - in_dim)))
    ws = jnp.stack([
        jnp.pad(w.astype(compute_dtype),
                ((0, k_pad - w.shape[0]), (0, n_pad - w.shape[1])))
        for (w, _) in params])                                  # (L, k_pad, n_pad)
    bs = jnp.stack([
        jnp.pad(b.astype(jnp.float32), (0, n_pad - b.shape[0])).reshape(1, n_pad)
        for (_, b) in params])                                  # (L, 1, n_pad)

    kernel = functools.partial(_mlp_fused_kernel, n_layers=L, k_pad=k_pad,
                               n_pad=n_pad, compute_dtype=compute_dtype)

    cost = pl.CostEstimate(
        flops=2 * Mp * k_pad * n_pad * L,
        transcendentals=0,
        bytes_accessed=(xc.size * xc.dtype.itemsize
                        + ws.size * ws.dtype.itemsize
                        + bs.size * 4
                        + Mp * np_last * jnp.dtype(out_dtype).itemsize),
    )

    out = pl.pallas_call(
        kernel,
        out_shape=jax.ShapeDtypeStruct((Mp, np_last), out_dtype),
        grid_spec=pltpu.PrefetchScalarGridSpec(
            num_scalar_prefetch=0,
            grid=(Mp // tm, L),
            in_specs=[
                pl.BlockSpec((tm, k_pad), lambda m, l: (m, 0)),       # fetched once per m
                pl.BlockSpec((1, k_pad, n_pad), lambda m, l: (l, 0, 0)),
                pl.BlockSpec((1, 1, n_pad), lambda m, l: (l, 0, 0)),
            ],
            out_specs=pl.BlockSpec((tm, np_last), lambda m, l: (m, 0)),
            scratch_shapes=[pltpu.VMEM((tm, d_max), jnp.float32)],
        ),
        compiler_params=pltpu.CompilerParams(
            dimension_semantics=("parallel", "arbitrary"),
            vmem_limit_bytes=32 * 1024 * 1024,
        ),
        cost_estimate=cost,
    )(xc, ws, bs)

    return out[:B, :out_dim]


def _fused_vmem_bytes(tm, k_pad, n_pad, np_last, d_max, compute_dtype, out_dtype):
    ci = jnp.dtype(compute_dtype).itemsize
    oi = jnp.dtype(out_dtype).itemsize
    return (2 * k_pad * n_pad * ci        # weight block (double buffered)
            + 2 * tm * k_pad * ci         # x block
            + 2 * n_pad * 4               # bias block
            + 2 * tm * np_last * oi       # output block
            + tm * d_max * 4)             # resident activation scratch


_FUSED_VMEM_BUDGET = 24 * 1024 * 1024     # conservative: fits v5e/v6e/v7x scoped VMEM


# ----------------------------------------------------------------------------
# Per-layer tiled linear (+ReLU) fallback for hidden dims too large to fuse.
# ----------------------------------------------------------------------------
def _linear_kernel(x_ref, w_ref, b_ref, o_ref, acc_ref, *, apply_relu: bool):
    k = pl.program_id(2)

    @pl.when(k == 0)
    def _():
        acc_ref[...] = jnp.zeros_like(acc_ref)

    acc_ref[...] += jnp.dot(
        x_ref[...], w_ref[...], preferred_element_type=jnp.float32
    )

    @pl.when(k == pl.num_programs(2) - 1)
    def _():
        out = acc_ref[...] + b_ref[...]
        if apply_relu:
            out = jnp.maximum(out, 0.0)
        o_ref[...] = out.astype(o_ref.dtype)


def linear_pallas(x, w, b, apply_relu: bool, *,
                  compute_dtype=jnp.bfloat16, out_dtype=None):
    """Tiled fused linear (+ optional ReLU): y = relu?(x @ w + b)."""
    B, K = x.shape
    Kw, N = w.shape
    assert K == Kw, (K, Kw)
    out_dtype = out_dtype or x.dtype

    tm = min(256, _round_up(B, 16))
    tn = min(512, _round_up(N, 128))
    tk = min(512, _round_up(K, 128))

    Mp = _round_up(B, tm)
    Kp = _round_up(K, tk)
    Np = _round_up(N, tn)

    xc = x.astype(compute_dtype)
    wc = w.astype(compute_dtype)
    if (Mp, Kp) != (B, K):
        xc = jnp.pad(xc, ((0, Mp - B), (0, Kp - K)))
    if (Kp, Np) != (K, N):
        wc = jnp.pad(wc, ((0, Kp - K), (0, Np - N)))
    b2 = b.astype(jnp.float32).reshape(1, N)
    if Np != N:
        b2 = jnp.pad(b2, ((0, 0), (0, Np - N)))

    grid = (Mp // tm, Np // tn, Kp // tk)

    cost = pl.CostEstimate(
        flops=2 * Mp * Kp * Np,
        transcendentals=0,
        bytes_accessed=(xc.size * xc.dtype.itemsize
                        + wc.size * wc.dtype.itemsize
                        + b2.size * 4
                        + Mp * Np * jnp.dtype(out_dtype).itemsize),
    )

    kernel = functools.partial(_linear_kernel, apply_relu=apply_relu)
    out = pl.pallas_call(
        kernel,
        out_shape=jax.ShapeDtypeStruct((Mp, Np), out_dtype),
        grid_spec=pltpu.PrefetchScalarGridSpec(
            num_scalar_prefetch=0,
            grid=grid,
            in_specs=[
                pl.BlockSpec((tm, tk), lambda i, j, k: (i, k)),
                pl.BlockSpec((tk, tn), lambda i, j, k: (k, j)),
                pl.BlockSpec((1, tn), lambda i, j, k: (0, j)),
            ],
            out_specs=pl.BlockSpec((tm, tn), lambda i, j, k: (i, j)),
            scratch_shapes=[pltpu.VMEM((tm, tn), jnp.float32)],
        ),
        compiler_params=pltpu.CompilerParams(
            dimension_semantics=("parallel", "parallel", "arbitrary"),
            vmem_limit_bytes=32 * 1024 * 1024,
        ),
        cost_estimate=cost,
    )(xc, wc, b2)

    return out[:B, :N]


# ----------------------------------------------------------------------------
# Params / forward / reference
# ----------------------------------------------------------------------------
def init_mlp_params(key, in_dim, hidden_dim, out_dim, n_layers,
                    dtype=jnp.float32):
    """Mirrors the PyTorch init:
    kaiming_uniform_(a=sqrt(5)) => U(-1/sqrt(fan_in), 1/sqrt(fan_in)) on weights,
    bias => U(-1/sqrt(fan_in), 1/sqrt(fan_in))."""
    params = []
    for i in range(n_layers):
        d_in = in_dim if i == 0 else hidden_dim
        d_out = out_dim if i == n_layers - 1 else hidden_dim
        key, kw, kb = jax.random.split(key, 3)
        bound = 1.0 / jnp.sqrt(jnp.asarray(d_in, dtype))
        # stored transposed relative to PyTorch: (in_dim, out_dim)
        w = jax.random.uniform(kw, (d_in, d_out), dtype, -bound, bound)
        b = jax.random.uniform(kb, (d_out,), dtype, -bound, bound)
        params.append((w, b))
    return params


def mlp_forward_per_layer(params, x, *, compute_dtype=jnp.bfloat16):
    n_layers = len(params)
    h = x
    for i, (w, b) in enumerate(params):
        apply_relu = i < n_layers - 1
        h = linear_pallas(h, w, b, apply_relu,
                          compute_dtype=compute_dtype, out_dtype=x.dtype)
    return h


def mlp_forward(params, x, *, compute_dtype=jnp.bfloat16):
    """Fused single-kernel MLP when the weights fit VMEM, else per-layer."""
    B = x.shape[0]
    out_dim = params[-1][0].shape[1]
    k_pad = max(_round_up(w.shape[0], 128) for (w, _) in params)
    n_pad = max(_round_up(w.shape[1], 128) for (w, _) in params)
    np_last = _round_up(out_dim, 128)
    tm = min(256, _round_up(B, 16))
    vmem = _fused_vmem_bytes(tm, k_pad, n_pad, np_last, max(k_pad, n_pad),
                             compute_dtype, x.dtype)
    if vmem <= _FUSED_VMEM_BUDGET:
        return mlp_fused_pallas(params, x, compute_dtype=compute_dtype,
                                out_dtype=x.dtype)
    return mlp_forward_per_layer(params, x, compute_dtype=compute_dtype)


def mlp_reference(params, x, *, compute_dtype=jnp.bfloat16):
    """Pure-JAX reference with the same dtype policy as the kernel paths
    (bf16 operands, f32 accumulation)."""
    n_layers = len(params)
    h = x
    for i, (w, b) in enumerate(params):
        acc = jnp.dot(h.astype(compute_dtype), w.astype(compute_dtype),
                      preferred_element_type=jnp.float32)
        acc = acc + b.astype(jnp.float32)
        if i < n_layers - 1:
            acc = jnp.maximum(acc, 0.0)
        h = acc.astype(x.dtype)
    return h


if __name__ == "__main__":
    in_dim, hidden_dim, out_dim, n_layers = 16, 32, 8, 3
    batch = 8

    key = jax.random.PRNGKey(0)
    key, kx = jax.random.split(key)
    x = jax.random.normal(kx, (batch, in_dim), jnp.float32)

    params = init_mlp_params(key, in_dim, hidden_dim, out_dim, n_layers)

    ref = mlp_reference(params, x)

    # Fused single-kernel path (default for these shapes).
    out_fused = jax.block_until_ready(mlp_forward(params, x))
    assert out_fused.shape == (batch, out_dim), out_fused.shape
    assert jnp.allclose(out_fused, ref, atol=1e-3, rtol=1e-3), (
        float(jnp.max(jnp.abs(out_fused - ref))))

    # Per-layer tiled fallback path (used when weights don't fit VMEM).
    out_layered = jax.block_until_ready(mlp_forward_per_layer(params, x))
    assert out_layered.shape == (batch, out_dim), out_layered.shape
    assert jnp.allclose(out_layered, ref, atol=1e-3, rtol=1e-3), (
        float(jnp.max(jnp.abs(out_layered - ref))))

    print("KERNEL_OK")
</pallas_src>

<mosaic_0001>
module attributes {stable_mosaic.version = 11 : i64} {
  func.func @_mlp_fused_kernel(%arg0: i32, %arg1: i32, %arg2: memref<16x128xbf16, #tpu.memory_space<vmem>>, %arg3: memref<1x128x128xbf16, #tpu.memory_space<vmem>>, %arg4: memref<1x1x128xf32, #tpu.memory_space<vmem>>, %arg5: memref<16x128xf32, #tpu.memory_space<vmem>>, %arg6: memref<16x128xf32, #tpu.memory_space<vmem>>) attributes {dimension_semantics = [#tpu.dimension_semantics<parallel>, #tpu.dimension_semantics<arbitrary>], iteration_bounds = array<i64: 1, 3>, scalar_prefetch = 0 : i64, scratch_operands = 1 : i64, tpu.core_type = #tpu.core_type<tc>, window_params = [{transform_indices = @transform_0, window_bounds = array<i64: 16, 128>}, {transform_indices = @transform_1, window_bounds = array<i64: 1, 128, 128>}, {transform_indices = @transform_2, window_bounds = array<i64: 1, 1, 128>}, {transform_indices = @transform_3, window_bounds = array<i64: 16, 128>}]} {
    %c0_i32 = arith.constant 0 : i32
    %0 = arith.cmpi eq, %arg1, %c0_i32 : i32
    %1 = arith.extui %0 : i1 to i32
    %c0_i32_0 = arith.constant 0 : i32
    %2 = arith.cmpi ne, %1, %c0_i32_0 : i32
    scf.if %2 {
      %c0_12 = arith.constant 0 : index
      %c0_13 = arith.constant 0 : index
      %19 = vector.load %arg2[%c0_12, %c0_13] : memref<16x128xbf16, #tpu.memory_space<vmem>>, vector<16x128xbf16>
      %20 = arith.extf %19 : vector<16x128xbf16> to vector<16x128xf32>
      %c0_14 = arith.constant 0 : index
      %c0_15 = arith.constant 0 : index
      %21 = vector.load %arg6[%c0_14, %c0_15] : memref<16x128xf32, #tpu.memory_space<vmem>>, vector<16x128xf32>
      tpu.vector_store %arg6[%c0_14, %c0_15], %20 {strides = array<i32>} : memref<16x128xf32, #tpu.memory_space<vmem>>, vector<16x128xf32>,
    } else {
    }
    %c0 = arith.constant 0 : index
    %c0_1 = arith.constant 0 : index
    %3 = vector.load %arg6[%c0, %c0_1] : memref<16x128xf32, #tpu.memory_space<vmem>>, vector<16x128xf32>
    %4 = arith.truncf %3 : vector<16x128xf32> to vector<16x128xbf16>
    %c0_2 = arith.constant 0 : index
    %c0_3 = arith.constant 0 : index
    %c0_4 = arith.constant 0 : index
    %5 = vector.load %arg3[%c0_2, %c0_3, %c0_4] : memref<1x128x128xbf16, #tpu.memory_space<vmem>>, vector<1x128x128xbf16>
    %6 = vector.shape_cast %5 : vector<1x128x128xbf16> to vector<128x128xbf16>
    %cst = arith.constant dense<0.000000e+00> : vector<16x128xf32>
    %7 = tpu.matmul %4, %6, %cst {dimension_numbers = #tpu.dot_dimension_numbers<[1], [0], [0], [1], [0, 0, 1, 1], [], []>} : vector<16x128xbf16>, vector<128x128xbf16>, vector<16x128xf32> -> vector<16x128xf32>
    %c0_5 = arith.constant 0 : index
    %c0_6 = arith.constant 0 : index
    %c0_7 = arith.constant 0 : index
    %8 = vector.load %arg4[%c0_5, %c0_6, %c0_7] : memref<1x1x128xf32, #tpu.memory_space<vmem>>, vector<1x1x128xf32>
    %9 = vector.shape_cast %8 : vector<1x1x128xf32> to vector<1x128xf32>
    %10 = vector.broadcast %9 : vector<1x128xf32> to vector<16x128xf32>
    %11 = arith.addf %7, %10 : vector<16x128xf32>
    %c2_i32 = arith.constant 2 : i32
    %12 = arith.cmpi eq, %arg1, %c2_i32 : i32
    %cst_8 = arith.constant 0.000000e+00 : f32
    %13 = vector.broadcast %cst_8 : f32 to vector<16x128xf32>
    %14 = arith.maximumf %11, %13 : vector<16x128xf32>
    %15 = arith.select %12, %11, %14 : vector<16x128xf32>
    %c0_9 = arith.constant 0 : index
    %c0_10 = arith.constant 0 : index
    %16 = vector.load %arg6[%c0_9, %c0_10] : memref<16x128xf32, #tpu.memory_space<vmem>>, vector<16x128xf32>
    tpu.vector_store %arg6[%c0_9, %c0_10], %15 {strides = array<i32>} : memref<16x128xf32, #tpu.memory_space<vmem>>, vector<16x128xf32>,
    %17 = arith.extui %12 : i1 to i32
    %c0_i32_11 = arith.constant 0 : i32
    %18 = arith.cmpi ne, %17, %c0_i32_11 : i32
    scf.if %18 {
      %c0_12 = arith.constant 0 : index
      %c0_13 = arith.constant 0 : index
      %19 = vector.load %arg5[%c0_12, %c0_13] : memref<16x128xf32, #tpu.memory_space<vmem>>, vector<16x128xf32>
      tpu.vector_store %arg5[%c0_12, %c0_13], %11 {strides = array<i32>} : memref<16x128xf32, #tpu.memory_space<vmem>>, vector<16x128xf32>,
    } else {
    }
    return
  }
  func.func @transform_0(%arg0: i32, %arg1: i32) -> (i32, i32) {
    %c0_i32 = arith.constant 0 : i32
    %c0_i32_0 = arith.constant 0 : i32
    return %arg0, %c0_i32 : i32, i32
  }
  func.func @transform_1(%arg0: i32, %arg1: i32) -> (i32, i32, i32) {
    %c0_i32 = arith.constant 0 : i32
    %c0_i32_0 = arith.constant 0 : i32
    %c0_i32_1 = arith.constant 0 : i32
    return %arg1, %c0_i32, %c0_i32_0 : i32, i32, i32
  }
  func.func @transform_2(%arg0: i32, %arg1: i32) -> (i32, i32, i32) {
    %c0_i32 = arith.constant 0 : i32
    %c0_i32_0 = arith.constant 0 : i32
    %c0_i32_1 = arith.constant 0 : i32
    return %arg1, %c0_i32, %c0_i32_0 : i32, i32, i32
  }
  func.func @transform_3(%arg0: i32, %arg1: i32) -> (i32, i32) {
    %c0_i32 = arith.constant 0 : i32
    %c0_i32_0 = arith.constant 0 : i32
    return %arg0, %c0_i32 : i32, i32
  }
}

</mosaic_0001>

<llo_original>
// kernel: tpu_custom_call.1
$region0: #{tpu_custom_call.1}
  #allocation0 [shape = 'u32[]', space=smem, size = 0x4, offset = 0x4, fixed_abs, tag = 'smem constant byte address 0x4 - core index']
  #allocation1 [shape = 'u32[72,128]{1,0:T(1,128)}', space=vmem, size = 0x9000, scoped, tag = 'internal scratch']
  #allocation2 [shape = 'f32[16,128]{1,0:T(8,128)}', space=vmem, size = 0x2000, scoped, tag = 'scratch operand']
  %s0 = inlined_call_operand.hbm [shape: bf16[16,128], index: 0, kind: input, shape index: {}]
  %s1 = inlined_call_operand.hbm [shape: bf16[3,128,128], index: 1, kind: input, shape index: {}]
  %s2 = inlined_call_operand.hbm [shape: f32[3,1,128], index: 2, kind: input, shape index: {}]
  %s3 = inlined_call_operand.hbm [shape: f32[16,128], index: 3, kind: output, shape index: {}]
  %s4 = sld [smem:[#allocation0]]
  $region65: #{tpu_custom_call.1} parent=0
    _
  %s6 = ssub.s32 1, %s4
  %s7 = scalar_select 0, %s6, %s4
  $region1: #{tpu_custom_call.1} parent=0
    #allocation3 [shape = 'u8[4096]{0}', space=vmem, size = 0x1000, scoped, tag = 'input window, operand 0, single buffered']
    #allocation4 [shape = 's32[2]{0}', space=sflag, size = 0x8, scoped, tag = 'scoped memory for tpu_custom_call.1']
    #allocation5 [shape = 's32[2]{0}', space=sflag, size = 0x8, scoped, tag = 'scoped memory for tpu_custom_call.1']
    #allocation6 [shape = 'u8[65536]{0}', space=vmem, size = 0x10000, scoped, tag = 'input window, operand 1']
    #allocation7 [shape = 's32[2]{0}', space=sflag, size = 0x8, scoped, tag = 'scoped memory for tpu_custom_call.1']
    #allocation8 [shape = 'u8[1024]{0}', space=vmem, size = 0x400, scoped, tag = 'input window, operand 2']
    #allocation9 [shape = 'u8[8192]{0}', space=vmem, size = 0x2000, scoped, tag = 'output window, operand 0, single buffered']
    %8 = vsyncpa [#allocation4], 0
    %9 = vsyncpa [#allocation7], 0
    %s10 = scalar_lea.sflag [#allocation7], 1
    %11 = vsyncpa %s10, 0
    %12 = vsyncpa [#allocation5], 0
    loop: start=0, step=1, limit=5
    $region2: #{tpu_custom_call.1} parent=1 // loop_pre_header
      _
    $region3: #{tpu_custom_call.1} parent=1 // loop_header
      %s14 = sphi 0, %s18
      %p15 = scmp.ge.s32.totalorder %s14, 5
      %s21 = sphi 0, %s33
      %s22 = sphi 0, %s29
      %s23 = sphi 0, %s21
      %s24 = sphi 0, %s22
      %s25 = sphi 0, %s23
      %s26 = sphi 0, %s24
      %s36 = sphi 0, %s38
      %s39 = sphi 0, %s36
      %s40 = sphi 0, %s39
      %s56 = sphi 0, %s40
      %s62 = sphi 0, %s64
      %s65 = sphi 0, %s62
      %s66 = sphi 0, %s65
      %s82 = sphi 0, %s66
      %s88 = sphi 0, %s90
      %s91 = sphi 0, %s88
      %s92 = sphi 0, %s91
      %s108 = sphi 0, %s92
      %s114 = sphi 0, %s116
      %s117 = sphi 0, %s114
      %s118 = sphi 0, %s117
      %s134 = sphi 0, %s118
    $region4: #{tpu_custom_call.1} parent=1 // loop_header_branch
      %17 = sbr.rel (%p15) target = $region8
    $region5: #{tpu_custom_call.1} parent=1 // loop_body
      %s19 = ssub.s32 %s14, 1
      %s20 = ssub.s32 %s14, 2
      %s27 = sadd.s32 1, %s22
      %p28 = scmp.ge.s32.totalorder %s27, 3
      %s29 = scalar_select %p28, 0, %s27
      %s30 = sadd.s32 1, %s21
      %s31 = scalar_select %p28, %s30, %s21
      %p32 = scmp.ge.s32.totalorder %s31, 1
      %s33 = scalar_select %p32, 0, %s31
      %s34 = ssub.s32 %s21, %s33
      %p35 = scmp.eq.s32.totalorder %s34, 0
      %s37 = sadd.s32 %s36, 1
      %s38 = scalar_select %p35, %s36, %s37
      %p41 = pneg %p35
      %p42 = scmp.eq.s32.totalorder %s14, 2
      %p43 = por %p41, %p42
      %p44 = scmp.ne.s32.totalorder %s36, %s39
      %p45 = scmp.eq.s32.totalorder %s14, 0
      %p46 = por %p44, %p45
      %p47 = scmp.ne.s32.totalorder %s36, %s39
      %p48 = scmp.eq.s32.totalorder %s19, 2
      %p49 = por %p47, %p48
      %p50 = scmp.ne.s32.totalorder %s39, %s40
      %p51 = scmp.eq.s32.totalorder %s19, 0
      %p52 = por %p50, %p51
      %p53 = scmp.ne.s32.totalorder %s39, %s40
      %p54 = scmp.eq.s32.totalorder %s20, 2
      %p55 = por %p53, %p54
      %p57 = scmp.ne.s32.totalorder %s40, %s56
      %p58 = scmp.eq.s32.totalorder %s20, 0
      %p59 = por %p57, %p58
      %s60 = ssub.s32 %s22, %s29
      %p61 = scmp.eq.s32.totalorder %s60, 0
      %s63 = sadd.s32 %s62, 1
      %s64 = scalar_select %p61, %s62, %s63
      %p67 = pneg %p61
      %p68 = scmp.eq.s32.totalorder %s14, 2
      %p69 = por %p67, %p68
      %p70 = scmp.ne.s32.totalorder %s62, %s65
      %p71 = scmp.eq.s32.totalorder %s14, 0
      %p72 = por %p70, %p71
      %p73 = scmp.ne.s32.totalorder %s62, %s65
      %p74 = scmp.eq.s32.totalorder %s19, 2
      %p75 = por %p73, %p74
      %p76 = scmp.ne.s32.totalorder %s65, %s66
      %p77 = scmp.eq.s32.totalorder %s19, 0
      %p78 = por %p76, %p77
      %p79 = scmp.ne.s32.totalorder %s65, %s66
      %p80 = scmp.eq.s32.totalorder %s20, 2
      %p81 = por %p79, %p80
      %p83 = scmp.ne.s32.totalorder %s66, %s82
      %p84 = scmp.eq.s32.totalorder %s20, 0
      %p85 = por %p83, %p84
      %s86 = ssub.s32 %s22, %s29
      %p87 = scmp.eq.s32.totalorder %s86, 0
      %s89 = sadd.s32 %s88, 1
      %s90 = scalar_select %p87, %s88, %s89
      %p93 = pneg %p87
      %p94 = scmp.eq.s32.totalorder %s14, 2
      %p95 = por %p93, %p94
      %p96 = scmp.ne.s32.totalorder %s88, %s91
      %p97 = scmp.eq.s32.totalorder %s14, 0
      %p98 = por %p96, %p97
      %p99 = scmp.ne.s32.totalorder %s88, %s91
      %p100 = scmp.eq.s32.totalorder %s19, 2
      %p101 = por %p99, %p100
      %p102 = scmp.ne.s32.totalorder %s91, %s92
      %p103 = scmp.eq.s32.totalorder %s19, 0
      %p104 = por %p102, %p103
      %p105 = scmp.ne.s32.totalorder %s91, %s92
      %p106 = scmp.eq.s32.totalorder %s20, 2
      %p107 = por %p105, %p106
      %p109 = scmp.ne.s32.totalorder %s92, %s108
      %p110 = scmp.eq.s32.totalorder %s20, 0
      %p111 = por %p109, %p110
      %s112 = ssub.s32 %s21, %s33
      %p113 = scmp.eq.s32.totalorder %s112, 0
      %s115 = sadd.s32 %s114, 1
      %s116 = scalar_select %p113, %s114, %s115
      %p119 = pneg %p113
      %p120 = scmp.eq.s32.totalorder %s14, 2
      %p121 = por %p119, %p120
      %p122 = scmp.ne.s32.totalorder %s114, %s117
      %p123 = scmp.eq.s32.totalorder %s14, 0
      %p124 = por %p122, %p123
      %p125 = scmp.ne.s32.totalorder %s114, %s117
      %p126 = scmp.eq.s32.totalorder %s19, 2
      %p127 = por %p125, %p126
      %p128 = scmp.ne.s32.totalorder %s117, %s118
      %p129 = scmp.eq.s32.totalorder %s19, 0
      %p130 = por %p128, %p129
      %p131 = scmp.ne.s32.totalorder %s117, %s118
      %p132 = scmp.eq.s32.totalorder %s20, 2
      %p133 = por %p131, %p132
      %p135 = scmp.ne.s32.totalorder %s118, %s134
      %p136 = scmp.eq.s32.totalorder %s20, 0
      %p137 = por %p135, %p136
      %p138 = scmp.le.s32.totalorder 1, %s14
      %p139 = scmp.lt.s32.totalorder %s14, 4
      %p140 = pnand %p138, %p139
      %p141 = pneg %p140
      // Predicated region
      $region9: #{tpu_custom_call.1} parent=5 // pred_check
        _
      $region10: #{tpu_custom_call.1} parent=5 // pred_check_branch
        %143 = sbr.rel (%p140) target = $region12
      $region11: #{tpu_custom_call.1} parent=5 // pred_region
        %s144 = ssub.s32 %s14, 1
        // Predicated region
        $region13: #{tpu_custom_call.1} parent=11 // pred_check
          %p145 = pneg %p52
        $region14: #{tpu_custom_call.1} parent=11 // pred_check_branch
          %147 = sbr.rel (%p145) target = $region16
        $region15: #{tpu_custom_call.1} parent=11 // pred_region
          %s148 = smul.u32 2, %s23
          %150 = vsyncadd [#allocation4], 0
          %s151 = smul.addr %s148, 4
          %s152 = scalar_lea.hbm %s0, %s151
          %s153 = sshll.u32 %s152, 4
          %s154 = int_to_ptr.hbm [resolvable:$true] %s153
          %s155 = sshll.u32 [#allocation3], 4
          %s156 = int_to_ptr.vmem [resolvable:$true] %s155
          %161 = dma.hbm_to_vmem [thread:$0]  %s154, 128, %s156, [#allocation4], 64, 64, 4
        $region16: #{tpu_custom_call.1} parent=11 // pred_fallthru
          _
      $region12: #{tpu_custom_call.1} parent=5 // pred_fallthru
        _
      %p162 = scmp.lt.s32.totalorder %s14, 3
      // Predicated region
      $region17: #{tpu_custom_call.1} parent=5 // pred_check
        %p163 = pneg %p162
      $region18: #{tpu_custom_call.1} parent=5 // pred_check_branch
        %165 = sbr.rel (%p163) target = $region20
      $region19: #{tpu_custom_call.1} parent=5 // pred_region
        // Predicated region
        $region21: #{tpu_custom_call.1} parent=19 // pred_check
          %p166 = pneg %p72
        $region22: #{tpu_custom_call.1} parent=19 // pred_check_branch
          %168 = sbr.rel (%p166) target = $region24
        $region23: #{tpu_custom_call.1} parent=19 // pred_region
          %s169 = sand.u32 %s14, 1
          %s170 = scalar_lea.sflag [#allocation7], %s169
          %s171 = sand.u32 %s62, 1
          %s172 = smul.addr %s171, 64
          %s173 = scalar_lea.vmem [#allocation6], %s172
          %175 = vsyncadd %s170, 0
          %s176 = smul.addr %s22, 16
          %s177 = smul.addr %s176, 4
          %s178 = scalar_lea.hbm %s1, %s177
          %s179 = sshll.u32 %s178, 4
          %s180 = int_to_ptr.hbm [resolvable:$true] %s179
          %s181 = sshll.u32 %s173, 4
          %s182 = int_to_ptr.vmem [resolvable:$true] %s181
          %187 = dma.hbm_to_vmem [thread:$0]  %s180, 1024, %s182, %s170, 64, 64, 4
        $region24: #{tpu_custom_call.1} parent=19 // pred_fallthru
          _
        // Predicated region
        $region25: #{tpu_custom_call.1} parent=19 // pred_check
          %p188 = pneg %p98
        $region26: #{tpu_custom_call.1} parent=19 // pred_check_branch
          %190 = sbr.rel (%p188) target = $region28
        $region27: #{tpu_custom_call.1} parent=19 // pred_region
          %s191 = sand.u32 %s14, 1
          %s192 = scalar_lea.sflag [#allocation7], %s191
          %s193 = sand.u32 %s88, 1
          %s194 = scalar_lea.vmem [#allocation8], %s193
          %196 = vsyncadd %s192, 0
          %s197 = scalar_lea.hbm %s2, %s22
          %s199 = sshll.u32 %s197, 4
          %s200 = int_to_ptr.hbm [resolvable:$true] %s199
          %s201 = sshll.u32 %s194, 4
          %s202 = int_to_ptr.vmem [resolvable:$true] %s201
          %204 = dma.hbm_to_vmem [thread:$0]  %s200, 16, %s202, %s192
        $region28: #{tpu_custom_call.1} parent=19 // pred_fallthru
          _
      $region20: #{tpu_custom_call.1} parent=5 // pred_fallthru
        _
      %p205 = scmp.le.s32.totalorder 1, %s14
      %p206 = scmp.lt.s32.totalorder %s14, 4
      %p207 = pnand %p205, %p206
      %p208 = pneg %p207
      // Predicated region
      $region29: #{tpu_custom_call.1} parent=5 // pred_check
        _
      $region30: #{tpu_custom_call.1} parent=5 // pred_check_branch
        %210 = sbr.rel (%p207) target = $region32
      $region31: #{tpu_custom_call.1} parent=5 // pred_region
        %s211 = ssub.s32 %s14, 1
        // Predicated region
        $region33: #{tpu_custom_call.1} parent=31 // pred_check
          %p212 = pneg %p52
        $region34: #{tpu_custom_call.1} parent=31 // pred_check_branch
          %214 = sbr.rel (%p212) target = $region36
        $region35: #{tpu_custom_call.1} parent=31 // pred_region
          %216 = dma.done [#allocation4], 128
        $region36: #{tpu_custom_call.1} parent=31 // pred_fallthru
          _
        %s217 = sand.u32 %s19, 1
        %s218 = scalar_lea.sflag [#allocation7], %s217
        %s219 = sand.u32 %s65, 1
        %s220 = smul.addr %s219, 64
        %s221 = scalar_lea.vmem [#allocation6], %s220
        // Predicated region
        $region37: #{tpu_custom_call.1} parent=31 // pred_check
          %p222 = pneg %p78
        $region38: #{tpu_custom_call.1} parent=31 // pred_check_branch
          %224 = sbr.rel (%p222) target = $region40
        $region39: #{tpu_custom_call.1} parent=31 // pred_region
          %226 = dma.done %s218, 1024
        $region40: #{tpu_custom_call.1} parent=31 // pred_fallthru
          _
        %s227 = sand.u32 %s19, 1
        %s228 = scalar_lea.sflag [#allocation7], %s227
        %s229 = sand.u32 %s91, 1
        %s230 = scalar_lea.vmem [#allocation8], %s229
        // Predicated region
        $region41: #{tpu_custom_call.1} parent=31 // pred_check
          %p231 = pneg %p104
        $region42: #{tpu_custom_call.1} parent=31 // pred_check_branch
          %233 = sbr.rel (%p231) target = $region44
        $region43: #{tpu_custom_call.1} parent=31 // pred_region
          %235 = dma.done %s228, 16
        $region44: #{tpu_custom_call.1} parent=31 // pred_fallthru
          _
        %p236 = pneg %p52
        %p237 = pneg %p49
        %s238 = sand.u32 %s19, 1
        %s239 = scalar_lea.sflag [#allocation7], %s238
        %s240 = sand.u32 %s65, 1
        %s241 = smul.addr %s240, 64
        %s242 = scalar_lea.vmem [#allocation6], %s241
        %p243 = pneg %p78
        %p244 = pneg %p75
        %s245 = sand.u32 %s19, 1
        %s246 = scalar_lea.sflag [#allocation7], %s245
        %s247 = sand.u32 %s91, 1
        %s248 = scalar_lea.vmem [#allocation8], %s247
        %p249 = pneg %p104
        %p250 = pneg %p101
        %p251 = pneg %p130
        %p252 = pneg %p127
        %s253 = smul.u32 2, %s23
        %s254 = smul.u32 2, %s23
        %p255 = scmp.eq.s32.totalorder %s24, 0
        // Predicated region
        $region45: #{tpu_custom_call.1} parent=31 // pred_check
          %p256 = pneg %p255
        $region46: #{tpu_custom_call.1} parent=31 // pred_check_branch
          %258 = sbr.rel (%p256) target = $region48
        $region47: #{tpu_custom_call.1} parent=31 // pred_region
          %v259 = vld [vmem:[#allocation3] sm:$0xf]
          %v260 = vld [vmem:[#allocation3 + $0x4] sm:$0xf]
          %v261 = vunpack.c.l.bf16 %v259
          %v262 = vunpack.c.l.bf16 %v260
          %263 = vst [vmem:[#allocation2] sm:$0xff] %v261
          %264 = vst [vmem:[#allocation2 + $0x8] sm:$0xff] %v262
        $region48: #{tpu_custom_call.1} parent=31 // pred_fallthru
          _
        %v265 = vld [vmem:[#allocation2] sm:$0xff]
        %v266 = vld [vmem:[#allocation2 + $0x8] sm:$0xff]
        %v267 = vpack.c.bf16 %v266, %v265
        %v268 = vld [vmem:[%s221] sm:$0xf]
        %v269 = vld [vmem:[%s221 + $0x4] sm:$0xf]
        %v270 = vld [vmem:[%s221 + $0x8] sm:$0xf]
        %v271 = vld [vmem:[%s221 + $0xc] sm:$0xf]
        %v272 = vld [vmem:[%s221 + $0x10] sm:$0xf]
        %v273 = vld [vmem:[%s221 + $0x14] sm:$0xf]
        %v274 = vld [vmem:[%s221 + $0x18] sm:$0xf]
        %v275 = vld [vmem:[%s221 + $0x1c] sm:$0xf]
        %v276 = vld [vmem:[%s221 + $0x20] sm:$0xf]
        %v277 = vld [vmem:[%s221 + $0x24] sm:$0xf]
        %v278 = vld [vmem:[%s221 + $0x28] sm:$0xf]
        %v279 = vld [vmem:[%s221 + $0x2c] sm:$0xf]
        %v280 = vld [vmem:[%s221 + $0x30] sm:$0xf]
        %v281 = vld [vmem:[%s221 + $0x34] sm:$0xf]
        %v282 = vld [vmem:[%s221 + $0x38] sm:$0xf]
        %v283 = vld [vmem:[%s221 + $0x3c] sm:$0xf]
        %v284 = vld [vmem:[%s230] sm:$0x1]
        %v286 = vperm.slane %v284, 0
        %v304 = vunpack.c.l.b16 %v268
        %v305 = vunpack.c.l.b16 %v269
        %v306 = vunpack.c.l.b16 %v270
        %v307 = vunpack.c.l.b16 %v271
        %v308 = vunpack.c.l.b16 %v272
        %v309 = vunpack.c.l.b16 %v273
        %v310 = vunpack.c.l.b16 %v274
        %v311 = vunpack.c.l.b16 %v275
        %v312 = vunpack.c.l.b16 %v276
        %v313 = vunpack.c.l.b16 %v277
        %v314 = vunpack.c.l.b16 %v278
        %v315 = vunpack.c.l.b16 %v279
        %v316 = vunpack.c.l.b16 %v280
        %v317 = vunpack.c.l.b16 %v281
        %v318 = vunpack.c.l.b16 %v282
        %v319 = vunpack.c.l.b16 %v283
        %v320 = vpack.c.b16 %v305, %v304
        %v321 = vpack.c.b16 %v307, %v306
        %v322 = vpack.c.b16 %v309, %v308
        %v323 = vpack.c.b16 %v311, %v310
        %v324 = vpack.c.b16 %v313, %v312
        %v325 = vpack.c.b16 %v315, %v314
        %v326 = vpack.c.b16 %v317, %v316
        %v327 = vpack.c.b16 %v319, %v318
        %336 = vmatpush.bf16.msra.mxu0 %v327
        %337 = vmatpush.bf16.msra.mxu0 %v326
        %338 = vmatpush.bf16.msra.mxu0 %v325
        %339 = vmatpush.bf16.msra.mxu0 %v324
        %340 = vmatpush.bf16.msra.mxu0 %v323
        %341 = vmatpush.bf16.msra.mxu0 %v322
        %342 = vmatpush.bf16.msra.mxu0 %v321
        %343 = vmatpush.bf16.msra.mxu0 %v320
        %344 = vmatmul.bf16.gmra.mxu0 %v267
        %v345 = vpop.f32.mrf.mxu0
        %v346 = vadd.f32 %v286, %v345
        %v347 = vpop.f32.mrf.mxu0
        %v348 = vadd.f32 %v286, %v347
        %349 = vdwg.mxu0
        %p350 = scmp.eq.s32.totalorder %s24, 2
        %v351 = vmax.f32 %v346, 0.0
        %v352 = vmax.f32 %v348, 0.0
        %s353 = scalar_select %p350, 1, 0
        %v354 = vstv %s353
        %vm355 = vcmp.eq.s32.totalorder %v354, 1
        %v356 = vsel %vm355, %v346, %v351
        %v357 = vsel %vm355, %v348, %v352
        %358 = vst [vmem:[#allocation2] sm:$0xff] %v356
        %359 = vst [vmem:[#allocation2 + $0x8] sm:$0xff] %v357
        // Predicated region
        $region49: #{tpu_custom_call.1} parent=31 // pred_check
          %p360 = pneg %p350
        $region50: #{tpu_custom_call.1} parent=31 // pred_check_branch
          %362 = sbr.rel (%p360) target = $region52
        $region51: #{tpu_custom_call.1} parent=31 // pred_region
          %363 = vst [vmem:[#allocation9] sm:$0xff] %v346
          %364 = vst [vmem:[#allocation9 + $0x8] sm:$0xff] %v348
        $region52: #{tpu_custom_call.1} parent=31 // pred_fallthru
          _
        // Predicated region
        $region53: #{tpu_custom_call.1} parent=31 // pred_check
          %p365 = pneg %p127
        $region54: #{tpu_custom_call.1} parent=31 // pred_check_branch
          %367 = sbr.rel (%p365) target = $region56
        $region55: #{tpu_custom_call.1} parent=31 // pred_region
          %s368 = smul.u32 2, %s23
          %370 = vsyncadd [#allocation5], 0
          %s371 = smul.addr %s368, 8
          %s372 = scalar_lea.hbm %s3, %s371
          %s373 = sshll.u32 [#allocation9], 4
          %s374 = int_to_ptr.vmem [resolvable:$true] %s373
          %s375 = sshll.u32 %s372, 4
          %s376 = int_to_ptr.hbm [resolvable:$true] %s375
          %381 = dma.vmem_to_hbm [thread:$0]  %s374, 256, %s376, [#allocation5], 128, 128, 8
        $region56: #{tpu_custom_call.1} parent=31 // pred_fallthru
          _
        // Predicated region
        $region57: #{tpu_custom_call.1} parent=31 // pred_check
          %p382 = pneg %p127
        $region58: #{tpu_custom_call.1} parent=31 // pred_check_branch
          %384 = sbr.rel (%p382) target = $region60
        $region59: #{tpu_custom_call.1} parent=31 // pred_region
          %386 = dma.done [#allocation5], 256
        $region60: #{tpu_custom_call.1} parent=31 // pred_fallthru
          _
      $region32: #{tpu_custom_call.1} parent=5 // pred_fallthru
        _
      %p387 = scmp.le.s32.totalorder 2, %s14
      // Predicated region
      $region61: #{tpu_custom_call.1} parent=5 // pred_check
        %p388 = pneg %p387
      $region62: #{tpu_custom_call.1} parent=5 // pred_check_branch
        %390 = sbr.rel (%p388) target = $region64
      $region63: #{tpu_custom_call.1} parent=5 // pred_region
        %s391 = ssub.s32 %s14, 2
      $region64: #{tpu_custom_call.1} parent=5 // pred_fallthru
        _
    $region6: #{tpu_custom_call.1} parent=1 // loop_footer
      %s18 = sadd.s32 1, %s14
    $region7: #{tpu_custom_call.1} parent=1 // loop_footer_branch
      %13 = sbr.rel target = $region3
    $region8: #{tpu_custom_call.1} parent=1 // loop_exit
      _
    %392 = vsyncpa [#allocation4], 1
    %s393 = scalar_lea.sflag [#allocation4], 1
    %394 = vsyncpa %s393, 1
    %395 = vsyncpa [#allocation7], 1
    %s396 = scalar_lea.sflag [#allocation7], 1
    %397 = vsyncpa %s396, 1
    %398 = vsyncpa [#allocation5], 1
    %s399 = scalar_lea.sflag [#allocation5], 1
    %400 = vsyncpa %s399, 1

</llo_original>
